<compile_context>
chip_gen: v7x
topology: tpu7x:2x2x1
jax: 0.10.0
libtpu: 0.0.40
codegen_flags: <defaults>
</compile_context>

<pallas_src>
import functools

import jax
import jax.numpy as jnp
from jax.experimental import pallas as pl
from jax.experimental.pallas import tpu as pltpu


_KERNEL_SIZE = 11
_SIGMA = 1.5
_K1 = 0.01
_K2 = 0.03


def _gaussian_1d(kernel_size, sigma):
    half = (kernel_size - 1) * 0.5
    coords = jnp.linspace(-half, half, kernel_size)
    g = jnp.exp(-0.5 * (coords / sigma) ** 2)
    return (g / jnp.sum(g)).astype(jnp.float32)


def _reflect_blur_matrix(n, kernel_size, sigma):
    """(n, n) matrix B such that B @ v == VALID 1-D gaussian conv of the
    reflect-padded (PyTorch 'reflect') vector v."""
    g = _gaussian_1d(kernel_size, sigma)                                   # (K,)
    pad = (kernel_size - 1) // 2
    t = jnp.arange(n)[:, None] + jnp.arange(kernel_size)[None, :] - pad    # (n, K)
    t = jnp.where(t < 0, -t, t)
    t = jnp.where(t > n - 1, 2 * (n - 1) - t, t)
    onehot = (t[:, :, None] == jnp.arange(n)[None, None, :]).astype(jnp.float32)  # (n, K, n)
    return jnp.sum(g[None, :, None] * onehot, axis=1)                      # (n, n)


def _ldec_kernel(dec_ref, real_ref, bh_ref, bwt_ref, out_ref, *,
                 c1, c2, lambda_3, inv_chw, inv_hw):
    """One grid step = bn images (grid is fully parallel).

    dec_ref, real_ref : (bn, C, H, W)  VMEM
    bh_ref            : (H, H)         VMEM row-blur matrix (reflect pad folded in)
    bwt_ref           : (W, W)         VMEM column-blur matrix (pre-transposed)
    out_ref           : (bn, 8, 128)   VMEM lane-dense per-image partial results
    """
    bn, C, H, W = dec_ref.shape
    G = 5 * bn * C            # 5 maps x bn images x C channels
    bcw = bn * C * W          # lane width of one map chunk after re-stacking

    bh = bh_ref[...]
    bwt = bwt_ref[...]

    # Row-stacked raw maps: rows ordered [map, b, c, h].
    x = dec_ref[...].reshape(bn * C * H, W)
    y = real_ref[...].reshape(bn * C * H, W)
    z = jnp.concatenate([x, y, x * x, y * y, x * y], axis=0)         # (5*bn*C*H, W)

    # Matmul #1: column blur of all maps at once (M = 5*bn*C*H).
    t1 = jnp.dot(z, bwt, preferred_element_type=jnp.float32)         # (5*bn*C*H, W)

    # Re-stack the maps onto the lane dim (map-major) so one more matmul
    # finishes the blur and all later elementwise work is lane-dense.
    t2 = jnp.concatenate([t1[g * H:(g + 1) * H, :] for g in range(G)], axis=1)  # (H, G*W)

    # Matmul #2: row blur of all maps at once (N = 5*bn*C*W, lane-dense).
    t3 = jnp.dot(bh, t2, preferred_element_type=jnp.float32)         # (H, G*W)

    mu1 = t3[:, 0 * bcw:1 * bcw]
    mu2 = t3[:, 1 * bcw:2 * bcw]
    s11 = t3[:, 2 * bcw:3 * bcw]
    s22 = t3[:, 3 * bcw:4 * bcw]
    s12 = t3[:, 4 * bcw:5 * bcw]

    mu1_sq = mu1 * mu1
    mu2_sq = mu2 * mu2
    mu12 = mu1 * mu2
    a1 = 2.0 * mu12 + c1
    a2 = 2.0 * (s12 - mu12) + c2
    b1 = mu1_sq + mu2_sq + c1
    b2 = (s11 - mu1_sq) + (s22 - mu2_sq) + c2
    # divide -> EUP reciprocal + VPU multiply (EUP slot is otherwise idle here)
    ssim_map = (a1 * a2) * pl.reciprocal(b1 * b2, approx=True)        # (H, bn*C*W)

    absdiff = jnp.abs(x - y)                                          # (bn*C*H, W)

    for b in range(bn):   # static, tiny: per-image reductions + output writes
        ssim_b = jnp.sum(ssim_map[:, b * C * W:(b + 1) * C * W])      # sum over C,H,W
        l1_b = jnp.sum(absdiff[b * C * H:(b + 1) * C * H, :])         # sum over C,H,W
        # wrapper computes  loss = lambda_3 + mean_i(contrib_i)
        contrib = (-lambda_3) * (ssim_b * inv_chw) + (1.0 - lambda_3) * (l1_b * inv_hw)
        out_ref[b] = jnp.full((8, 128), contrib, dtype=jnp.float32)


def _pick_bn(N, C, H, W, budget_bytes=6 << 20):
    """Largest divisor of N whose dec+real block fits the budget while keeping
    >= 2 grid steps (so v7x's second TensorCore still gets work)."""
    per_img_bytes = 2 * C * H * W * 4
    best = 1
    for bn in range(1, N + 1):
        if N % bn:
            continue
        if bn * per_img_bytes > budget_bytes:
            continue
        if N >= 2 and N // bn < 2:
            continue
        best = bn
    return best


def _vmem_limit_bytes(bn, C, H, W):
    f32 = 4
    blocks = (2 * 2 * bn * C * H * W * f32        # dec + real, double-buffered
              + 2 * (H * H + W * W) * f32         # bh + bwt, double-buffered
              + 2 * bn * 8 * 128 * f32)           # out, double-buffered
    temps = 7 * 5 * bn * C * H * W * f32 + (H * H + W * W) * f32
    est = 2 * (blocks + temps)
    # never below the per-generation scoped default; cap at 128 MiB
    return int(min(128 << 20, max(32 << 20, est)))


def ldec_loss(dec_img, real_img, lambda_3, *, data_range=1.0,
              kernel_size=_KERNEL_SIZE, sigma=_SIGMA, k1=_K1, k2=_K2,
              batch_block=None):
    """dec_img, real_img: float32 NCHW arrays; H, W > (kernel_size-1)//2."""
    N, C, H, W = dec_img.shape
    c1 = float((k1 * data_range) ** 2)
    c2 = float((k2 * data_range) ** 2)
    bn = batch_block if batch_block is not None else _pick_bn(N, C, H, W)
    assert N % bn == 0, (N, bn)

    # Blur matrices built once in plain JAX (glue); reflection padding folded in.
    bh = _reflect_blur_matrix(H, kernel_size, sigma)           # (H, H)
    bwt = _reflect_blur_matrix(W, kernel_size, sigma).T        # (W, W)

    kernel = functools.partial(
        _ldec_kernel, c1=c1, c2=c2, lambda_3=float(lambda_3),
        inv_chw=1.0 / float(C * H * W), inv_hw=1.0 / float(H * W))

    per_image = pl.pallas_call(
        kernel,
        out_shape=jax.ShapeDtypeStruct((N, 8, 128), jnp.float32),
        grid_spec=pltpu.PrefetchScalarGridSpec(
            num_scalar_prefetch=0,
            grid=(N // bn,),
            in_specs=[
                pl.BlockSpec((bn, C, H, W), lambda n: (n, 0, 0, 0)),
                pl.BlockSpec((bn, C, H, W), lambda n: (n, 0, 0, 0)),
                # grid-invariant blur matrices (fetched once; see TODOs above
                # for single-buffering / band-tiling at large H, W)
                pl.BlockSpec((H, H), lambda n: (0, 0)),
                pl.BlockSpec((W, W), lambda n: (0, 0)),
            ],
            out_specs=pl.BlockSpec((bn, 8, 128), lambda n: (n, 0, 0)),
        ),
        compiler_params=pltpu.CompilerParams(
            dimension_semantics=("parallel",),            # per-image outputs -> megacore OK
            vmem_limit_bytes=_vmem_limit_bytes(bn, C, H, W),
        ),
    )(dec_img, real_img, bh, bwt)

    # loss = lambda_3*(1 - mean_ssim) + (1 - lambda_3)*mean_l1
    #      = lambda_3 + mean_i( -lambda_3*ssim_i + (1 - lambda_3)*l1_i )
    return lambda_3 + jnp.mean(per_image[:, 0, 0])


def _ref_ldec_loss(dec, real, lambda_3, *, data_range=1.0,
                   kernel_size=_KERNEL_SIZE, sigma=_SIGMA, k1=_K1, k2=_K2):
    """Pure-JAX reference (exact shifted-add depthwise gaussian blur)."""
    N, C, H, W = dec.shape
    c1 = (k1 * data_range) ** 2
    c2 = (k2 * data_range) ** 2
    g = _gaussian_1d(kernel_size, sigma)
    k2d = jnp.outer(g, g)
    pad = (kernel_size - 1) // 2

    def blur(x):
        xp = jnp.pad(x, ((0, 0), (0, 0), (pad, pad), (pad, pad)), mode="reflect")
        out = jnp.zeros_like(x)
        for a in range(kernel_size):
            for b in range(kernel_size):
                out = out + k2d[a, b] * xp[:, :, a:a + H, b:b + W]
        return out

    mu1, mu2 = blur(dec), blur(real)
    s11, s22, s12 = blur(dec * dec), blur(real * real), blur(dec * real)
    mu1_sq, mu2_sq, mu12 = mu1 * mu1, mu2 * mu2, mu1 * mu2
    a1 = 2.0 * mu12 + c1
    a2 = 2.0 * (s12 - mu12) + c2
    b1 = mu1_sq + mu2_sq + c1
    b2 = (s11 - mu1_sq) + (s22 - mu2_sq) + c2
    ssim_metric = jnp.mean((a1 * a2) / (b1 * b2))
    l1 = jnp.mean(jnp.sum(jnp.abs(dec - real), axis=1))
    return lambda_3 * (1.0 - ssim_metric) + (1.0 - lambda_3) * l1


if __name__ == "__main__":
    # Small shapes consistent with the module: NCHW; H, W must exceed the
    # reflect pad of 5 for the 11x11 SSIM window.
    N, C, H, W = 2, 3, 16, 16
    lambda_3 = 0.7

    key = jax.random.PRNGKey(0)
    ka, kb = jax.random.split(key)
    dec = jax.random.uniform(ka, (N, C, H, W), dtype=jnp.float32)    # data_range = 1.0
    real = jax.random.uniform(kb, (N, C, H, W), dtype=jnp.float32)

    loss = ldec_loss(dec, real, lambda_3)
    jax.block_until_ready(loss)

    ref = _ref_ldec_loss(dec, real, lambda_3)
    assert jnp.allclose(loss, ref, rtol=5e-4, atol=5e-4), (loss, ref)
    print("KERNEL_OK")
</pallas_src>

<mosaic_0001>
module attributes {stable_mosaic.version = 11 : i64} {
  func.func @_ldec_kernel(%arg0: i32, %arg1: memref<1x3x16x16xf32, #tpu.memory_space<vmem>>, %arg2: memref<1x3x16x16xf32, #tpu.memory_space<vmem>>, %arg3: memref<16x16xf32, #tpu.memory_space<vmem>>, %arg4: memref<16x16xf32, #tpu.memory_space<vmem>>, %arg5: memref<1x8x128xf32, #tpu.memory_space<vmem>>) attributes {dimension_semantics = [#tpu.dimension_semantics<parallel>], iteration_bounds = array<i64: 2>, scalar_prefetch = 0 : i64, scratch_operands = 0 : i64, tpu.core_type = #tpu.core_type<tc>, window_params = [{transform_indices = @transform_0, window_bounds = array<i64: 1, 3, 16, 16>}, {transform_indices = @transform_1, window_bounds = array<i64: 1, 3, 16, 16>}, {pipeline_mode = #tpu.pipeline_mode<synchronous>, transform_indices = @transform_2, window_bounds = array<i64: 16, 16>}, {pipeline_mode = #tpu.pipeline_mode<synchronous>, transform_indices = @transform_3, window_bounds = array<i64: 16, 16>}, {transform_indices = @transform_4, window_bounds = array<i64: 1, 8, 128>}]} {
    %c0 = arith.constant 0 : index
    %c0_0 = arith.constant 0 : index
    %0 = vector.load %arg3[%c0, %c0_0] : memref<16x16xf32, #tpu.memory_space<vmem>>, vector<16x16xf32>
    %c0_1 = arith.constant 0 : index
    %c0_2 = arith.constant 0 : index
    %1 = vector.load %arg4[%c0_1, %c0_2] : memref<16x16xf32, #tpu.memory_space<vmem>>, vector<16x16xf32>
    %c0_3 = arith.constant 0 : index
    %c0_4 = arith.constant 0 : index
    %c0_5 = arith.constant 0 : index
    %c0_6 = arith.constant 0 : index
    %2 = vector.load %arg1[%c0_3, %c0_4, %c0_5, %c0_6] : memref<1x3x16x16xf32, #tpu.memory_space<vmem>>, vector<1x3x16x16xf32>
    %3 = vector.shape_cast %2 : vector<1x3x16x16xf32> to vector<48x16xf32>
    %c0_7 = arith.constant 0 : index
    %c0_8 = arith.constant 0 : index
    %c0_9 = arith.constant 0 : index
    %c0_10 = arith.constant 0 : index
    %4 = vector.load %arg2[%c0_7, %c0_8, %c0_9, %c0_10] : memref<1x3x16x16xf32, #tpu.memory_space<vmem>>, vector<1x3x16x16xf32>
    %5 = vector.shape_cast %4 : vector<1x3x16x16xf32> to vector<48x16xf32>
    %6 = arith.mulf %3, %3 : vector<48x16xf32>
    %7 = arith.mulf %5, %5 : vector<48x16xf32>
    %8 = arith.mulf %3, %5 : vector<48x16xf32>
    %9 = tpu.concatenate %3, %5, %6, %7, %8 in 0 : vector<48x16xf32>, vector<48x16xf32>, vector<48x16xf32>, vector<48x16xf32>, vector<48x16xf32> -> vector<240x16xf32>
    %cst = arith.constant dense<0.000000e+00> : vector<240x16xf32>
    %10 = tpu.matmul %9, %1, %cst {dimension_numbers = #tpu.dot_dimension_numbers<[1], [0], [0], [1], [0, 0, 1, 1], [], []>} : vector<240x16xf32>, vector<16x16xf32>, vector<240x16xf32> -> vector<240x16xf32>
    %11 = vector.extract_strided_slice %10 {offsets = [0, 0], sizes = [16, 16], strides = [1, 1]} : vector<240x16xf32> to vector<16x16xf32>
    %12 = vector.extract_strided_slice %10 {offsets = [16, 0], sizes = [16, 16], strides = [1, 1]} : vector<240x16xf32> to vector<16x16xf32>
    %13 = vector.extract_strided_slice %10 {offsets = [32, 0], sizes = [16, 16], strides = [1, 1]} : vector<240x16xf32> to vector<16x16xf32>
    %14 = vector.extract_strided_slice %10 {offsets = [48, 0], sizes = [16, 16], strides = [1, 1]} : vector<240x16xf32> to vector<16x16xf32>
    %15 = vector.extract_strided_slice %10 {offsets = [64, 0], sizes = [16, 16], strides = [1, 1]} : vector<240x16xf32> to vector<16x16xf32>
    %16 = vector.extract_strided_slice %10 {offsets = [80, 0], sizes = [16, 16], strides = [1, 1]} : vector<240x16xf32> to vector<16x16xf32>
    %17 = vector.extract_strided_slice %10 {offsets = [96, 0], sizes = [16, 16], strides = [1, 1]} : vector<240x16xf32> to vector<16x16xf32>
    %18 = vector.extract_strided_slice %10 {offsets = [112, 0], sizes = [16, 16], strides = [1, 1]} : vector<240x16xf32> to vector<16x16xf32>
    %19 = vector.extract_strided_slice %10 {offsets = [128, 0], sizes = [16, 16], strides = [1, 1]} : vector<240x16xf32> to vector<16x16xf32>
    %20 = vector.extract_strided_slice %10 {offsets = [144, 0], sizes = [16, 16], strides = [1, 1]} : vector<240x16xf32> to vector<16x16xf32>
    %21 = vector.extract_strided_slice %10 {offsets = [160, 0], sizes = [16, 16], strides = [1, 1]} : vector<240x16xf32> to vector<16x16xf32>
    %22 = vector.extract_strided_slice %10 {offsets = [176, 0], sizes = [16, 16], strides = [1, 1]} : vector<240x16xf32> to vector<16x16xf32>
    %23 = vector.extract_strided_slice %10 {offsets = [192, 0], sizes = [16, 16], strides = [1, 1]} : vector<240x16xf32> to vector<16x16xf32>
    %24 = vector.extract_strided_slice %10 {offsets = [208, 0], sizes = [16, 16], strides = [1, 1]} : vector<240x16xf32> to vector<16x16xf32>
    %25 = vector.extract_strided_slice %10 {offsets = [224, 0], sizes = [16, 16], strides = [1, 1]} : vector<240x16xf32> to vector<16x16xf32>
    %26 = tpu.concatenate %11, %12, %13, %14, %15, %16, %17, %18, %19, %20, %21, %22, %23, %24, %25 in 1 : vector<16x16xf32>, vector<16x16xf32>, vector<16x16xf32>, vector<16x16xf32>, vector<16x16xf32>, vector<16x16xf32>, vector<16x16xf32>, vector<16x16xf32>, vector<16x16xf32>, vector<16x16xf32>, vector<16x16xf32>, vector<16x16xf32>, vector<16x16xf32>, vector<16x16xf32>, vector<16x16xf32> -> vector<16x240xf32>
    %cst_11 = arith.constant dense<0.000000e+00> : vector<16x240xf32>
    %27 = tpu.matmul %0, %26, %cst_11 {dimension_numbers = #tpu.dot_dimension_numbers<[1], [0], [0], [1], [0, 0, 1, 1], [], []>} : vector<16x16xf32>, vector<16x240xf32>, vector<16x240xf32> -> vector<16x240xf32>
    %28 = vector.extract_strided_slice %27 {offsets = [0, 0], sizes = [16, 48], strides = [1, 1]} : vector<16x240xf32> to vector<16x48xf32>
    %29 = vector.extract_strided_slice %27 {offsets = [0, 48], sizes = [16, 48], strides = [1, 1]} : vector<16x240xf32> to vector<16x48xf32>
    %30 = vector.extract_strided_slice %27 {offsets = [0, 96], sizes = [16, 48], strides = [1, 1]} : vector<16x240xf32> to vector<16x48xf32>
    %31 = vector.extract_strided_slice %27 {offsets = [0, 144], sizes = [16, 48], strides = [1, 1]} : vector<16x240xf32> to vector<16x48xf32>
    %32 = vector.extract_strided_slice %27 {offsets = [0, 192], sizes = [16, 48], strides = [1, 1]} : vector<16x240xf32> to vector<16x48xf32>
    %33 = arith.mulf %28, %28 : vector<16x48xf32>
    %34 = arith.mulf %29, %29 : vector<16x48xf32>
    %35 = arith.mulf %28, %29 : vector<16x48xf32>
    %cst_12 = arith.constant 2.000000e+00 : f32
    %36 = vector.broadcast %cst_12 : f32 to vector<16x48xf32>
    %37 = arith.mulf %36, %35 : vector<16x48xf32>
    %cst_13 = arith.constant 9.99999974E-5 : f32
    %38 = vector.broadcast %cst_13 : f32 to vector<16x48xf32>
    %39 = arith.addf %37, %38 : vector<16x48xf32>
    %40 = arith.subf %32, %35 : vector<16x48xf32>
    %cst_14 = arith.constant 2.000000e+00 : f32
    %41 = vector.broadcast %cst_14 : f32 to vector<16x48xf32>
    %42 = arith.mulf %41, %40 : vector<16x48xf32>
    %cst_15 = arith.constant 8.99999984E-4 : f32
    %43 = vector.broadcast %cst_15 : f32 to vector<16x48xf32>
    %44 = arith.addf %42, %43 : vector<16x48xf32>
    %45 = arith.addf %33, %34 : vector<16x48xf32>
    %cst_16 = arith.constant 9.99999974E-5 : f32
    %46 = vector.broadcast %cst_16 : f32 to vector<16x48xf32>
    %47 = arith.addf %45, %46 : vector<16x48xf32>
    %48 = arith.subf %30, %33 : vector<16x48xf32>
    %49 = arith.subf %31, %34 : vector<16x48xf32>
    %50 = arith.addf %48, %49 : vector<16x48xf32>
    %cst_17 = arith.constant 8.99999984E-4 : f32
    %51 = vector.broadcast %cst_17 : f32 to vector<16x48xf32>
    %52 = arith.addf %50, %51 : vector<16x48xf32>
    %53 = arith.mulf %39, %44 : vector<16x48xf32>
    %54 = arith.mulf %47, %52 : vector<16x48xf32>
    %55 = tpu.reciprocal %54 {approx = true} : vector<16x48xf32> -> vector<16x48xf32>
    %56 = arith.mulf %53, %55 : vector<16x48xf32>
    %57 = arith.subf %3, %5 : vector<48x16xf32>
    %58 = math.absf %57 : vector<48x16xf32>
    %59 = vector.shape_cast %56 : vector<16x48xf32> to vector<1x16x48xf32>
    %cst_18 = arith.constant dense<0.000000e+00> : vector<1xf32>
    %60 = vector.multi_reduction <add>, %59, %cst_18 [1, 2] : vector<1x16x48xf32> to vector<1xf32>
    %61 = vector.shape_cast %60 : vector<1xf32> to vector<1x1x1xf32>
    %62 = vector.extract %61[0, 0, 0] : f32 from vector<1x1x1xf32>
    %63 = vector.shape_cast %58 : vector<48x16xf32> to vector<1x48x16xf32>
    %cst_19 = arith.constant dense<0.000000e+00> : vector<1xf32>
    %64 = vector.multi_reduction <add>, %63, %cst_19 [1, 2] : vector<1x48x16xf32> to vector<1xf32>
    %65 = vector.shape_cast %64 : vector<1xf32> to vector<1x1x1xf32>
    %66 = vector.extract %65[0, 0, 0] : f32 from vector<1x1x1xf32>
    %cst_20 = arith.constant 0.00130208337 : f32
    %67 = arith.mulf %62, %cst_20 : f32
    %cst_21 = arith.constant -0.699999988 : f32
    %68 = arith.mulf %cst_21, %67 : f32
    %cst_22 = arith.constant 3.906250e-03 : f32
    %69 = arith.mulf %66, %cst_22 : f32
    %cst_23 = arith.constant 3.000000e-01 : f32
    %70 = arith.mulf %cst_23, %69 : f32
    %71 = arith.addf %68, %70 : f32
    %72 = vector.broadcast %71 : f32 to vector<8x128xf32>
    %c0_24 = arith.constant 0 : index
    %c0_25 = arith.constant 0 : index
    %c0_26 = arith.constant 0 : index
    %73 = vector.load %arg5[%c0_24, %c0_25, %c0_26] : memref<1x8x128xf32, #tpu.memory_space<vmem>>, vector<1x8x128xf32>
    %74 = vector.shape_cast %73 : vector<1x8x128xf32> to vector<8x128xf32>
    %75 = vector.shape_cast %72 : vector<8x128xf32> to vector<1x8x128xf32>
    tpu.vector_store %arg5[%c0_24, %c0_25, %c0_26], %75 {strides = array<i32>} : memref<1x8x128xf32, #tpu.memory_space<vmem>>, vector<1x8x128xf32>,
    return
  }
  func.func @transform_0(%arg0: i32) -> (i32, i32, i32, i32) {
    %c0_i32 = arith.constant 0 : i32
    %c0_i32_0 = arith.constant 0 : i32
    %c0_i32_1 = arith.constant 0 : i32
    %c0_i32_2 = arith.constant 0 : i32
    return %arg0, %c0_i32, %c0_i32_0, %c0_i32_1 : i32, i32, i32, i32
  }
  func.func @transform_1(%arg0: i32) -> (i32, i32, i32, i32) {
    %c0_i32 = arith.constant 0 : i32
    %c0_i32_0 = arith.constant 0 : i32
    %c0_i32_1 = arith.constant 0 : i32
    %c0_i32_2 = arith.constant 0 : i32
    return %arg0, %c0_i32, %c0_i32_0, %c0_i32_1 : i32, i32, i32, i32
  }
  func.func @transform_2(%arg0: i32) -> (i32, i32) {
    %c0_i32 = arith.constant 0 : i32
    %c0_i32_0 = arith.constant 0 : i32
    %c0_i32_1 = arith.constant 0 : i32
    return %c0_i32, %c0_i32_0 : i32, i32
  }
  func.func @transform_3(%arg0: i32) -> (i32, i32) {
    %c0_i32 = arith.constant 0 : i32
    %c0_i32_0 = arith.constant 0 : i32
    %c0_i32_1 = arith.constant 0 : i32
    return %c0_i32, %c0_i32_0 : i32, i32
  }
  func.func @transform_4(%arg0: i32) -> (i32, i32, i32) {
    %c0_i32 = arith.constant 0 : i32
    %c0_i32_0 = arith.constant 0 : i32
    %c0_i32_1 = arith.constant 0 : i32
    return %arg0, %c0_i32, %c0_i32_0 : i32, i32, i32
  }
}

</mosaic_0001>

<llo_original>
// kernel: tpu_custom_call.1
$region0: #{tpu_custom_call.1}
  #allocation0 [shape = 'u32[]', space=smem, size = 0x4, offset = 0x4, fixed_abs, tag = 'smem constant byte address 0x4 - core index']
  #allocation1 [shape = 'u32[144,128]{1,0:T(1,128)}', space=vmem, size = 0x12000, scoped, tag = 'internal scratch']
  %s0 = inlined_call_operand.hbm [shape: f32[2,3,16,16], index: 0, kind: input, shape index: {}]
  %s1 = inlined_call_operand.hbm [shape: f32[2,3,16,16], index: 1, kind: input, shape index: {}]
  %s2 = inlined_call_operand.hbm [shape: f32[16,16], index: 2, kind: input, shape index: {}]
  %s3 = inlined_call_operand.hbm [shape: f32[16,16], index: 3, kind: input, shape index: {}]
  %s4 = inlined_call_operand.hbm [shape: f32[2,8,128], index: 4, kind: output, shape index: {}]
  %s5 = sld [smem:[#allocation0]]
  $region65: #{tpu_custom_call.1} parent=0
    _
  %s7 = ssub.s32 1, %s5
  %s8 = scalar_select 0, %s7, %s5
  $region1: #{tpu_custom_call.1} parent=0
    #allocation2 [shape = 'u8[49152]{0}', space=vmem, size = 0xc000, scoped, tag = 'input window, operand 0']
    #allocation3 [shape = 's32[2]{0}', space=sflag, size = 0x8, scoped, tag = 'scoped memory for tpu_custom_call.1']
    #allocation4 [shape = 's32[2]{0}', space=sflag, size = 0x8, scoped, tag = 'scoped memory for tpu_custom_call.1']
    #allocation5 [shape = 'u8[49152]{0}', space=vmem, size = 0xc000, scoped, tag = 'input window, operand 1']
    #allocation6 [shape = 's32[2]{0}', space=sflag, size = 0x8, scoped, tag = 'scoped memory for tpu_custom_call.1']
    #allocation7 [shape = 'u8[8192]{0}', space=vmem, size = 0x2000, scoped, tag = 'input window, operand 2, single buffered']
    #allocation8 [shape = 'u8[8192]{0}', space=vmem, size = 0x2000, scoped, tag = 'input window, operand 3, single buffered']
    #allocation9 [shape = 's32[1]{0}', space=sflag, size = 0x4, scoped, tag = 'scoped memory for tpu_custom_call.1']
    #allocation10 [shape = 'u8[8192]{0}', space=vmem, size = 0x2000, scoped, tag = 'output window, operand 0']
    %9 = vsyncpa [#allocation3], 0
    %s10 = scalar_lea.sflag [#allocation3], 1
    %11 = vsyncpa %s10, 0
    %12 = vsyncpa [#allocation6], 0
    %s13 = scalar_lea.sflag [#allocation6], 1
    %14 = vsyncpa %s13, 0
    %15 = vsyncpa [#allocation9], 0
    %16 = vsyncpa [#allocation4], 0
    %s17 = scalar_lea.sflag [#allocation4], 1
    %18 = vsyncpa %s17, 0
    loop: start=0, step=1, limit=4
    $region2: #{tpu_custom_call.1} parent=1 // loop_pre_header
      _
    $region3: #{tpu_custom_call.1} parent=1 // loop_header
      %s20 = sphi 0, %s24
      %p21 = scmp.ge.s32.totalorder %s20, 4
      %s30 = sphi 0, %s32
      %s33 = sphi 0, %s30
      %s34 = sphi 0, %s33
      %s50 = sphi 0, %s34
      %s56 = sphi 0, %s58
      %s59 = sphi 0, %s56
      %s60 = sphi 0, %s59
      %s76 = sphi 0, %s60
      %s80 = sphi 0, %s80
      %s82 = sphi 0, %s80
      %s83 = sphi 0, %s82
      %s97 = sphi 0, %s83
      %s101 = sphi 0, %s101
      %s103 = sphi 0, %s101
      %s104 = sphi 0, %s103
      %s118 = sphi 0, %s104
      %s124 = sphi 0, %s126
      %s127 = sphi 0, %s124
      %s128 = sphi 0, %s127
      %s144 = sphi 0, %s128
    $region4: #{tpu_custom_call.1} parent=1 // loop_header_branch
      %23 = sbr.rel (%p21) target = $region8
    $region5: #{tpu_custom_call.1} parent=1 // loop_body
      %s25 = ssub.s32 %s20, 1
      %s26 = ssub.s32 %s20, 2
      %s27 = sadd.s32 %s20, 1
      %s28 = ssub.s32 %s20, %s27
      %p29 = scmp.eq.s32.totalorder %s28, 0
      %s31 = sadd.s32 %s30, 1
      %s32 = scalar_select %p29, %s30, %s31
      %p35 = pneg %p29
      %p36 = scmp.eq.s32.totalorder %s20, 1
      %p37 = por %p35, %p36
      %p38 = scmp.ne.s32.totalorder %s30, %s33
      %p39 = scmp.eq.s32.totalorder %s20, 0
      %p40 = por %p38, %p39
      %p41 = scmp.ne.s32.totalorder %s30, %s33
      %p42 = scmp.eq.s32.totalorder %s25, 1
      %p43 = por %p41, %p42
      %p44 = scmp.ne.s32.totalorder %s33, %s34
      %p45 = scmp.eq.s32.totalorder %s25, 0
      %p46 = por %p44, %p45
      %p47 = scmp.ne.s32.totalorder %s33, %s34
      %p48 = scmp.eq.s32.totalorder %s26, 1
      %p49 = por %p47, %p48
      %p51 = scmp.ne.s32.totalorder %s34, %s50
      %p52 = scmp.eq.s32.totalorder %s26, 0
      %p53 = por %p51, %p52
      %s54 = ssub.s32 %s20, %s27
      %p55 = scmp.eq.s32.totalorder %s54, 0
      %s57 = sadd.s32 %s56, 1
      %s58 = scalar_select %p55, %s56, %s57
      %p61 = pneg %p55
      %p62 = scmp.eq.s32.totalorder %s20, 1
      %p63 = por %p61, %p62
      %p64 = scmp.ne.s32.totalorder %s56, %s59
      %p65 = scmp.eq.s32.totalorder %s20, 0
      %p66 = por %p64, %p65
      %p67 = scmp.ne.s32.totalorder %s56, %s59
      %p68 = scmp.eq.s32.totalorder %s25, 1
      %p69 = por %p67, %p68
      %p70 = scmp.ne.s32.totalorder %s59, %s60
      %p71 = scmp.eq.s32.totalorder %s25, 0
      %p72 = por %p70, %p71
      %p73 = scmp.ne.s32.totalorder %s59, %s60
      %p74 = scmp.eq.s32.totalorder %s26, 1
      %p75 = por %p73, %p74
      %p77 = scmp.ne.s32.totalorder %s60, %s76
      %p78 = scmp.eq.s32.totalorder %s26, 0
      %p79 = por %p77, %p78
      %s81 = sadd.s32 %s80, 1
      %p84 = scmp.eq.s32.totalorder %s20, 1
      %p85 = scmp.ne.s32.totalorder %s80, %s82
      %p86 = scmp.eq.s32.totalorder %s20, 0
      %p87 = por %p85, %p86
      %p88 = scmp.ne.s32.totalorder %s80, %s82
      %p89 = scmp.eq.s32.totalorder %s25, 1
      %p90 = por %p88, %p89
      %p91 = scmp.ne.s32.totalorder %s82, %s83
      %p92 = scmp.eq.s32.totalorder %s25, 0
      %p93 = por %p91, %p92
      %p94 = scmp.ne.s32.totalorder %s82, %s83
      %p95 = scmp.eq.s32.totalorder %s26, 1
      %p96 = por %p94, %p95
      %p98 = scmp.ne.s32.totalorder %s83, %s97
      %p99 = scmp.eq.s32.totalorder %s26, 0
      %p100 = por %p98, %p99
      %s102 = sadd.s32 %s101, 1
      %p105 = scmp.eq.s32.totalorder %s20, 1
      %p106 = scmp.ne.s32.totalorder %s101, %s103
      %p107 = scmp.eq.s32.totalorder %s20, 0
      %p108 = por %p106, %p107
      %p109 = scmp.ne.s32.totalorder %s101, %s103
      %p110 = scmp.eq.s32.totalorder %s25, 1
      %p111 = por %p109, %p110
      %p112 = scmp.ne.s32.totalorder %s103, %s104
      %p113 = scmp.eq.s32.totalorder %s25, 0
      %p114 = por %p112, %p113
      %p115 = scmp.ne.s32.totalorder %s103, %s104
      %p116 = scmp.eq.s32.totalorder %s26, 1
      %p117 = por %p115, %p116
      %p119 = scmp.ne.s32.totalorder %s104, %s118
      %p120 = scmp.eq.s32.totalorder %s26, 0
      %p121 = por %p119, %p120
      %s122 = ssub.s32 %s20, %s27
      %p123 = scmp.eq.s32.totalorder %s122, 0
      %s125 = sadd.s32 %s124, 1
      %s126 = scalar_select %p123, %s124, %s125
      %p129 = pneg %p123
      %p130 = scmp.eq.s32.totalorder %s20, 1
      %p131 = por %p129, %p130
      %p132 = scmp.ne.s32.totalorder %s124, %s127
      %p133 = scmp.eq.s32.totalorder %s20, 0
      %p134 = por %p132, %p133
      %p135 = scmp.ne.s32.totalorder %s124, %s127
      %p136 = scmp.eq.s32.totalorder %s25, 1
      %p137 = por %p135, %p136
      %p138 = scmp.ne.s32.totalorder %s127, %s128
      %p139 = scmp.eq.s32.totalorder %s25, 0
      %p140 = por %p138, %p139
      %p141 = scmp.ne.s32.totalorder %s127, %s128
      %p142 = scmp.eq.s32.totalorder %s26, 1
      %p143 = por %p141, %p142
      %p145 = scmp.ne.s32.totalorder %s128, %s144
      %p146 = scmp.eq.s32.totalorder %s26, 0
      %p147 = por %p145, %p146
      %p148 = scmp.le.s32.totalorder 1, %s20
      %p149 = scmp.lt.s32.totalorder %s20, 3
      %p150 = pnand %p148, %p149
      %p151 = pneg %p150
      // Predicated region
      $region9: #{tpu_custom_call.1} parent=5 // pred_check
        _
      $region10: #{tpu_custom_call.1} parent=5 // pred_check_branch
        %153 = sbr.rel (%p150) target = $region12
      $region11: #{tpu_custom_call.1} parent=5 // pred_region
        %s154 = ssub.s32 %s20, 1
        // Predicated region
        $region13: #{tpu_custom_call.1} parent=11 // pred_check
          %p155 = pneg %p93
        $region14: #{tpu_custom_call.1} parent=11 // pred_check_branch
          %157 = sbr.rel (%p155) target = $region16
        $region15: #{tpu_custom_call.1} parent=11 // pred_region
          %s159 = ssub.s32 256, 256
          %160 = vsyncadd [#allocation6], %s159
          %s161 = sshll.u32 [#allocation7], 4
          %s162 = int_to_ptr.vmem [resolvable:$true] %s161
          %167 = dma.hbm_to_vmem [thread:$0]  %s2, 256, %s162, [#allocation6], 128, 128, 8
        $region16: #{tpu_custom_call.1} parent=11 // pred_fallthru
          _
        // Predicated region
        $region17: #{tpu_custom_call.1} parent=11 // pred_check
          %p168 = pneg %p114
        $region18: #{tpu_custom_call.1} parent=11 // pred_check_branch
          %170 = sbr.rel (%p168) target = $region20
        $region19: #{tpu_custom_call.1} parent=11 // pred_region
          %s172 = ssub.s32 256, 256
          %173 = vsyncadd [#allocation9], %s172
          %s174 = sshll.u32 [#allocation8], 4
          %s175 = int_to_ptr.vmem [resolvable:$true] %s174
          %180 = dma.hbm_to_vmem [thread:$0]  %s3, 256, %s175, [#allocation9], 128, 128, 8
        $region20: #{tpu_custom_call.1} parent=11 // pred_fallthru
          _
      $region12: #{tpu_custom_call.1} parent=5 // pred_fallthru
        _
      %p181 = scmp.lt.s32.totalorder %s20, 2
      // Predicated region
      $region21: #{tpu_custom_call.1} parent=5 // pred_check
        %p182 = pneg %p181
      $region22: #{tpu_custom_call.1} parent=5 // pred_check_branch
        %184 = sbr.rel (%p182) target = $region24
      $region23: #{tpu_custom_call.1} parent=5 // pred_region
        // Predicated region
        $region25: #{tpu_custom_call.1} parent=23 // pred_check
          %p185 = pneg %p40
        $region26: #{tpu_custom_call.1} parent=23 // pred_check_branch
          %187 = sbr.rel (%p185) target = $region28
        $region27: #{tpu_custom_call.1} parent=23 // pred_region
          %s188 = sand.u32 %s30, 1
          %s189 = scalar_lea.sflag [#allocation3], %s188
          %s190 = sand.u32 %s30, 1
          %s191 = smul.addr %s190, 48
          %s192 = scalar_lea.vmem [#allocation2], %s191
          %s194 = ssub.s32 768, 768
          %195 = vsyncadd %s189, %s194
          %s196 = smul.addr %s20, 6
          %s197 = smul.addr %s196, 128
          %s198 = scalar_lea.hbm %s0, %s197
          %s199 = sshll.u32 %s192, 4
          %s200 = int_to_ptr.vmem [resolvable:$true] %s199
          %205 = dma.hbm_to_vmem [thread:$0]  %s198, 768, %s200, %s189, 128, 128, 8
        $region28: #{tpu_custom_call.1} parent=23 // pred_fallthru
          _
        // Predicated region
        $region29: #{tpu_custom_call.1} parent=23 // pred_check
          %p206 = pneg %p66
        $region30: #{tpu_custom_call.1} parent=23 // pred_check_branch
          %208 = sbr.rel (%p206) target = $region32
        $region31: #{tpu_custom_call.1} parent=23 // pred_region
          %s209 = sand.u32 %s20, 1
          %s210 = scalar_lea.sflag [#allocation6], %s209
          %s211 = sand.u32 %s56, 1
          %s212 = smul.addr %s211, 48
          %s213 = scalar_lea.vmem [#allocation5], %s212
          %s215 = ssub.s32 768, 768
          %216 = vsyncadd %s210, %s215
          %s217 = smul.addr %s20, 6
          %s218 = smul.addr %s217, 128
          %s219 = scalar_lea.hbm %s1, %s218
          %s220 = sshll.u32 %s213, 4
          %s221 = int_to_ptr.vmem [resolvable:$true] %s220
          %226 = dma.hbm_to_vmem [thread:$0]  %s219, 768, %s221, %s210, 128, 128, 8
        $region32: #{tpu_custom_call.1} parent=23 // pred_fallthru
          _
      $region24: #{tpu_custom_call.1} parent=5 // pred_fallthru
        _
      %p227 = scmp.le.s32.totalorder 1, %s20
      %p228 = scmp.lt.s32.totalorder %s20, 3
      %p229 = pnand %p227, %p228
      %p230 = pneg %p229
      // Predicated region
      $region33: #{tpu_custom_call.1} parent=5 // pred_check
        _
      $region34: #{tpu_custom_call.1} parent=5 // pred_check_branch
        %232 = sbr.rel (%p229) target = $region36
      $region35: #{tpu_custom_call.1} parent=5 // pred_region
        %s233 = ssub.s32 %s20, 1
        %s234 = sand.u32 %s33, 1
        %s235 = scalar_lea.sflag [#allocation3], %s234
        %s236 = sand.u32 %s33, 1
        %s237 = smul.addr %s236, 48
        %s238 = scalar_lea.vmem [#allocation2], %s237
        // Predicated region
        $region37: #{tpu_custom_call.1} parent=35 // pred_check
          %p239 = pneg %p46
        $region38: #{tpu_custom_call.1} parent=35 // pred_check_branch
          %241 = sbr.rel (%p239) target = $region40
        $region39: #{tpu_custom_call.1} parent=35 // pred_region
          %242 = dma.done %s235, 768
        $region40: #{tpu_custom_call.1} parent=35 // pred_fallthru
          _
        %s243 = sand.u32 %s25, 1
        %s244 = scalar_lea.sflag [#allocation6], %s243
        %s245 = sand.u32 %s59, 1
        %s246 = smul.addr %s245, 48
        %s247 = scalar_lea.vmem [#allocation5], %s246
        // Predicated region
        $region41: #{tpu_custom_call.1} parent=35 // pred_check
          %p248 = pneg %p72
        $region42: #{tpu_custom_call.1} parent=35 // pred_check_branch
          %250 = sbr.rel (%p248) target = $region44
        $region43: #{tpu_custom_call.1} parent=35 // pred_region
          %251 = dma.done %s244, 768
        $region44: #{tpu_custom_call.1} parent=35 // pred_fallthru
          _
        // Predicated region
        $region45: #{tpu_custom_call.1} parent=35 // pred_check
          %p252 = pneg %p93
        $region46: #{tpu_custom_call.1} parent=35 // pred_check_branch
          %254 = sbr.rel (%p252) target = $region48
        $region47: #{tpu_custom_call.1} parent=35 // pred_region
          %255 = dma.done [#allocation6], 256
        $region48: #{tpu_custom_call.1} parent=35 // pred_fallthru
          _
        // Predicated region
        $region49: #{tpu_custom_call.1} parent=35 // pred_check
          %p256 = pneg %p114
        $region50: #{tpu_custom_call.1} parent=35 // pred_check_branch
          %258 = sbr.rel (%p256) target = $region52
        $region51: #{tpu_custom_call.1} parent=35 // pred_region
          %259 = dma.done [#allocation9], 256
        $region52: #{tpu_custom_call.1} parent=35 // pred_fallthru
          _
        %s260 = sand.u32 %s33, 1
        %s261 = scalar_lea.sflag [#allocation3], %s260
        %s262 = sand.u32 %s33, 1
        %s263 = smul.addr %s262, 48
        %s264 = scalar_lea.vmem [#allocation2], %s263
        %p265 = pneg %p46
        %p266 = pneg %p43
        %s267 = sand.u32 %s25, 1
        %s268 = scalar_lea.sflag [#allocation6], %s267
        %s269 = sand.u32 %s59, 1
        %s270 = smul.addr %s269, 48
        %s271 = scalar_lea.vmem [#allocation5], %s270
        %p272 = pneg %p72
        %p273 = pneg %p69
        %p274 = pneg %p93
        %p275 = pneg %p90
        %p276 = pneg %p114
        %p277 = pneg %p111
        %p278 = pneg %p140
        %p279 = pneg %p137
        %s280 = sand.u32 %s127, 1
        %s281 = scalar_lea.sflag [#allocation4], %s280
        %s282 = sand.u32 %s127, 1
        %s283 = smul.addr %s282, 8
        %s284 = scalar_lea.vmem [#allocation10], %s283
        %v285 = vld [vmem:[#allocation7] sm:$0xff]
        %v286 = vld [vmem:[#allocation7 + $0x8] sm:$0xff]
        %v287 = vld [vmem:[#allocation8] sm:$0xff]
        %v288 = vld [vmem:[#allocation8 + $0x8] sm:$0xff]
        %v289 = vld [vmem:[%s238] sm:$0xff]
        %v290 = vld [vmem:[%s238 + $0x8] sm:$0xff]
        %v291 = vld [vmem:[%s238 + $0x10] sm:$0xff]
        %v292 = vld [vmem:[%s238 + $0x18] sm:$0xff]
        %v293 = vld [vmem:[%s238 + $0x20] sm:$0xff]
        %v294 = vld [vmem:[%s238 + $0x28] sm:$0xff]
        %v295 = vld [vmem:[%s247] sm:$0xff]
        %v296 = vld [vmem:[%s247 + $0x8] sm:$0xff]
        %v297 = vld [vmem:[%s247 + $0x10] sm:$0xff]
        %v298 = vld [vmem:[%s247 + $0x18] sm:$0xff]
        %v299 = vld [vmem:[%s247 + $0x20] sm:$0xff]
        %v300 = vld [vmem:[%s247 + $0x28] sm:$0xff]
        %v301 = vmul.f32 %v289, %v289
        %v302 = vmul.f32 %v290, %v290
        %v303 = vmul.f32 %v291, %v291
        %v304 = vmul.f32 %v292, %v292
        %v305 = vmul.f32 %v293, %v293
        %v306 = vmul.f32 %v294, %v294
        %v307 = vmul.f32 %v295, %v295
        %v308 = vmul.f32 %v296, %v296
        %v309 = vmul.f32 %v297, %v297
        %v310 = vmul.f32 %v298, %v298
        %v311 = vmul.f32 %v299, %v299
        %v312 = vmul.f32 %v300, %v300
        %v313 = vmul.f32 %v289, %v295
        %v314 = vmul.f32 %v290, %v296
        %v315 = vmul.f32 %v291, %v297
        %v316 = vmul.f32 %v292, %v298
        %v317 = vmul.f32 %v293, %v299
        %v318 = vmul.f32 %v294, %v300
        %vm319 = vcmask 130048
        %v321 = vsel %vm319, %v289, 0
        %v324 = vsel %vm319, %v290, 0
        %v327 = vsel %vm319, %v291, 0
        %v330 = vsel %vm319, %v292, 0
        %v333 = vsel %vm319, %v293, 0
        %v336 = vsel %vm319, %v294, 0
        %v339 = vsel %vm319, %v295, 0
        %v342 = vsel %vm319, %v296, 0
        %v345 = vsel %vm319, %v297, 0
        %v348 = vsel %vm319, %v298, 0
        %v351 = vsel %vm319, %v299, 0
        %v354 = vsel %vm319, %v300, 0
        %v357 = vsel %vm319, %v301, 0
        %v360 = vsel %vm319, %v302, 0
        %v363 = vsel %vm319, %v303, 0
        %v366 = vsel %vm319, %v304, 0
        %v369 = vsel %vm319, %v305, 0
        %v372 = vsel %vm319, %v306, 0
        %v375 = vsel %vm319, %v307, 0
        %v378 = vsel %vm319, %v308, 0
        %v381 = vsel %vm319, %v309, 0
        %v384 = vsel %vm319, %v310, 0
        %v387 = vsel %vm319, %v311, 0
        %v390 = vsel %vm319, %v312, 0
        %v393 = vsel %vm319, %v313, 0
        %v396 = vsel %vm319, %v314, 0
        %v399 = vsel %vm319, %v315, 0
        %v402 = vsel %vm319, %v316, 0
        %v405 = vsel %vm319, %v317, 0
        %v408 = vsel %vm319, %v318, 0
        %410 = vmatprep.subr.mxu0 0.0
        %411 = vmatpush1.msra.mxu0 %v287
        %412 = vmatprep.subr.mxu0 0.0
        %413 = vmatpush1.msra.mxu0 %v288
        %414 = vmatprep.subr.mxu0 0.0
        %415 = vmatpush1.msra.mxu0 0.0
        %416 = vmatprep.subr.mxu0 0.0
        %417 = vmatpush1.msra.mxu0 0.0
        %418 = vmatprep.subr.mxu0 0.0
        %419 = vmatpush1.msra.mxu0 0.0
        %420 = vmatprep.subr.mxu0 0.0
        %421 = vmatpush1.msra.mxu0 0.0
        %422 = vmatprep.subr.mxu0 0.0
        %423 = vmatpush1.msra.mxu0 0.0
        %424 = vmatprep.subr.mxu0 0.0
        %425 = vmatpush1.msra.mxu0 0.0
        %426 = vmatprep.subr.mxu0 0.0
        %427 = vmatpush1.msra.mxu0 0.0
        %428 = vmatprep.subr.mxu0 0.0
        %429 = vmatpush1.msra.mxu0 0.0
        %430 = vmatprep.subr.mxu0 0.0
        %431 = vmatpush1.msra.mxu0 0.0
        %432 = vmatprep.subr.mxu0 0.0
        %433 = vmatpush1.msra.mxu0 0.0
        %434 = vmatprep.subr.mxu0 0.0
        %435 = vmatpush1.msra.mxu0 0.0
        %436 = vmatprep.subr.mxu0 0.0
        %437 = vmatpush1.msra.mxu0 0.0
        %438 = vmatprep.subr.mxu0 0.0
        %439 = vmatpush1.msra.mxu0 0.0
        %440 = vmatprep.subr.mxu0 0.0
        %441 = vmatpush1.msra.mxu0 0.0
        %442 = vmatprep.subr.mxu0 0.0
        %443 = vmatpush1.msra.mxu0 0.0
        %444 = vmatprep.subr.mxu0 0.0
        %445 = vmatpush1.msra.mxu0 0.0
        %446 = vmatprep.subr.mxu0 0.0
        %447 = vmatpush1.msra.mxu0 0.0
        %448 = vmatprep.subr.mxu0 0.0
        %449 = vmatpush1.msra.mxu0 0.0
        %450 = vmatprep.subr.mxu0 0.0
        %451 = vmatpush1.msra.mxu0 0.0
        %452 = vmatprep.subr.mxu0 0.0
        %453 = vmatpush1.msra.mxu0 0.0
        %454 = vmatprep.subr.mxu0 0.0
        %455 = vmatpush1.msra.mxu0 0.0
        %456 = vmatprep.subr.mxu0 0.0
        %457 = vmatpush1.msra.mxu0 0.0
        %458 = vmatprep.subr.mxu0 0.0
        %459 = vmatpush1.msra.mxu0 0.0
        %460 = vmatprep.subr.mxu0 0.0
        %461 = vmatpush1.msra.mxu0 0.0
        %462 = vmatprep.subr.mxu0 0.0
        %463 = vmatpush1.msra.mxu0 0.0
        %464 = vmatprep.subr.mxu0 0.0
        %465 = vmatpush1.msra.mxu0 0.0
        %466 = vmatprep.subr.mxu0 0.0
        %467 = vmatpush1.msra.mxu0 0.0
        %468 = vmatprep.subr.mxu0 0.0
        %469 = vmatpush1.msra.mxu0 0.0
        %470 = vmatprep.subr.mxu0 0.0
        %471 = vmatpush1.msra.mxu0 0.0
        %472 = vmatprep.subr.mxu0 0.0
        %473 = vmatpush1.msra.mxu0 0.0
        %474 = vmatprep.mubr.f32.mxu0 0.0
        %475 = vmatmul.mubr.f32.gmra.mrb[0].mxu0 %v321
        %v476 = vpop.f32.mrb[0].mxu0
        %v477 = vadd.f32 0.0, %v476
        %v478 = vpop.f32.mrb[0].mxu0
        %479 = vmatprep.mubr.f32.mxu0 0.0
        %480 = vmatmul.mubr.f32.gmra.mrb[0].mxu0 %v324
        %v481 = vpop.f32.mrb[0].mxu0
        %v482 = vadd.f32 0.0, %v481
        %v483 = vpop.f32.mrb[0].mxu0
        %484 = vmatprep.mubr.f32.mxu0 0.0
        %485 = vmatmul.mubr.f32.gmra.mrb[0].mxu0 %v327
        %v486 = vpop.f32.mrb[0].mxu0
        %v487 = vadd.f32 0.0, %v486
        %v488 = vpop.f32.mrb[0].mxu0
        %489 = vmatprep.mubr.f32.mxu0 0.0
        %490 = vmatmul.mubr.f32.gmra.mrb[0].mxu0 %v330
        %v491 = vpop.f32.mrb[0].mxu0
        %v492 = vadd.f32 0.0, %v491
        %v493 = vpop.f32.mrb[0].mxu0
        %494 = vmatprep.mubr.f32.mxu0 0.0
        %495 = vmatmul.mubr.f32.gmra.mrb[0].mxu0 %v333
        %v496 = vpop.f32.mrb[0].mxu0
        %v497 = vadd.f32 0.0, %v496
        %v498 = vpop.f32.mrb[0].mxu0
        %499 = vmatprep.mubr.f32.mxu0 0.0
        %500 = vmatmul.mubr.f32.gmra.mrb[0].mxu0 %v336
        %v501 = vpop.f32.mrb[0].mxu0
        %v502 = vadd.f32 0.0, %v501
        %v503 = vpop.f32.mrb[0].mxu0
        %504 = vmatprep.mubr.f32.mxu0 0.0
        %505 = vmatmul.mubr.f32.gmra.mrb[0].mxu0 %v339
        %v506 = vpop.f32.mrb[0].mxu0
        %v507 = vadd.f32 0.0, %v506
        %v508 = vpop.f32.mrb[0].mxu0
        %509 = vmatprep.mubr.f32.mxu0 0.0
        %510 = vmatmul.mubr.f32.gmra.mrb[0].mxu0 %v342
        %v511 = vpop.f32.mrb[0].mxu0
        %v512 = vadd.f32 0.0, %v511
        %v513 = vpop.f32.mrb[0].mxu0
        %514 = vmatprep.mubr.f32.mxu0 0.0
        %515 = vmatmul.mubr.f32.gmra.mrb[0].mxu0 %v345
        %v516 = vpop.f32.mrb[0].mxu0
        %v517 = vadd.f32 0.0, %v516
        %v518 = vpop.f32.mrb[0].mxu0
        %519 = vmatprep.mubr.f32.mxu0 0.0
        %520 = vmatmul.mubr.f32.gmra.mrb[0].mxu0 %v348
        %v521 = vpop.f32.mrb[0].mxu0
        %v522 = vadd.f32 0.0, %v521
        %v523 = vpop.f32.mrb[0].mxu0
        %524 = vmatprep.mubr.f32.mxu0 0.0
        %525 = vmatmul.mubr.f32.gmra.mrb[0].mxu0 %v351
        %v526 = vpop.f32.mrb[0].mxu0
        %v527 = vadd.f32 0.0, %v526
        %v528 = vpop.f32.mrb[0].mxu0
        %529 = vmatprep.mubr.f32.mxu0 0.0
        %530 = vmatmul.mubr.f32.gmra.mrb[0].mxu0 %v354
        %v531 = vpop.f32.mrb[0].mxu0
        %v532 = vadd.f32 0.0, %v531
        %v533 = vpop.f32.mrb[0].mxu0
        %534 = vmatprep.mubr.f32.mxu0 0.0
        %535 = vmatmul.mubr.f32.gmra.mrb[0].mxu0 %v357
        %v536 = vpop.f32.mrb[0].mxu0
        %v537 = vadd.f32 0.0, %v536
        %v538 = vpop.f32.mrb[0].mxu0
        %539 = vmatprep.mubr.f32.mxu0 0.0
        %540 = vmatmul.mubr.f32.gmra.mrb[0].mxu0 %v360
        %v541 = vpop.f32.mrb[0].mxu0
        %v542 = vadd.f32 0.0, %v541
        %v543 = vpop.f32.mrb[0].mxu0
        %544 = vmatprep.mubr.f32.mxu0 0.0
        %545 = vmatmul.mubr.f32.gmra.mrb[0].mxu0 %v363
        %v546 = vpop.f32.mrb[0].mxu0
        %v547 = vadd.f32 0.0, %v546
        %v548 = vpop.f32.mrb[0].mxu0
        %549 = vmatprep.mubr.f32.mxu0 0.0
        %550 = vmatmul.mubr.f32.gmra.mrb[0].mxu0 %v366
        %v551 = vpop.f32.mrb[0].mxu0
        %v552 = vadd.f32 0.0, %v551
        %v553 = vpop.f32.mrb[0].mxu0
        %554 = vmatprep.mubr.f32.mxu0 0.0
        %555 = vmatmul.mubr.f32.gmra.mrb[0].mxu0 %v369
        %v556 = vpop.f32.mrb[0].mxu0
        %v557 = vadd.f32 0.0, %v556
        %v558 = vpop.f32.mrb[0].mxu0
        %559 = vmatprep.mubr.f32.mxu0 0.0
        %560 = vmatmul.mubr.f32.gmra.mrb[0].mxu0 %v372
        %v561 = vpop.f32.mrb[0].mxu0
        %v562 = vadd.f32 0.0, %v561
        %v563 = vpop.f32.mrb[0].mxu0
        %564 = vmatprep.mubr.f32.mxu0 0.0
        %565 = vmatmul.mubr.f32.gmra.mrb[0].mxu0 %v375
        %v566 = vpop.f32.mrb[0].mxu0
        %v567 = vadd.f32 0.0, %v566
        %v568 = vpop.f32.mrb[0].mxu0
        %569 = vmatprep.mubr.f32.mxu0 0.0
        %570 = vmatmul.mubr.f32.gmra.mrb[0].mxu0 %v378
        %v571 = vpop.f32.mrb[0].mxu0
        %v572 = vadd.f32 0.0, %v571
        %v573 = vpop.f32.mrb[0].mxu0
        %574 = vmatprep.mubr.f32.mxu0 0.0
        %575 = vmatmul.mubr.f32.gmra.mrb[0].mxu0 %v381
        %v576 = vpop.f32.mrb[0].mxu0
        %v577 = vadd.f32 0.0, %v576
        %v578 = vpop.f32.mrb[0].mxu0
        %579 = vmatprep.mubr.f32.mxu0 0.0
        %580 = vmatmul.mubr.f32.gmra.mrb[0].mxu0 %v384
        %v581 = vpop.f32.mrb[0].mxu0
        %v582 = vadd.f32 0.0, %v581
        %v583 = vpop.f32.mrb[0].mxu0
        %584 = vmatprep.mubr.f32.mxu0 0.0
        %585 = vmatmul.mubr.f32.gmra.mrb[0].mxu0 %v387
        %v586 = vpop.f32.mrb[0].mxu0
        %v587 = vadd.f32 0.0, %v586
        %v588 = vpop.f32.mrb[0].mxu0
        %589 = vmatprep.mubr.f32.mxu0 0.0
        %590 = vmatmul.mubr.f32.gmra.mrb[0].mxu0 %v390
        %v591 = vpop.f32.mrb[0].mxu0
        %v592 = vadd.f32 0.0, %v591
        %v593 = vpop.f32.mrb[0].mxu0
        %594 = vmatprep.mubr.f32.mxu0 0.0
        %595 = vmatmul.mubr.f32.gmra.mrb[0].mxu0 %v393
        %v596 = vpop.f32.mrb[0].mxu0
        %v597 = vadd.f32 0.0, %v596
        %v598 = vpop.f32.mrb[0].mxu0
        %599 = vmatprep.mubr.f32.mxu0 0.0
        %600 = vmatmul.mubr.f32.gmra.mrb[0].mxu0 %v396
        %v601 = vpop.f32.mrb[0].mxu0
        %v602 = vadd.f32 0.0, %v601
        %v603 = vpop.f32.mrb[0].mxu0
        %604 = vmatprep.mubr.f32.mxu0 0.0
        %605 = vmatmul.mubr.f32.gmra.mrb[0].mxu0 %v399
        %v606 = vpop.f32.mrb[0].mxu0
        %v607 = vadd.f32 0.0, %v606
        %v608 = vpop.f32.mrb[0].mxu0
        %609 = vmatprep.mubr.f32.mxu0 0.0
        %610 = vmatmul.mubr.f32.gmra.mrb[0].mxu0 %v402
        %v611 = vpop.f32.mrb[0].mxu0
        %v612 = vadd.f32 0.0, %v611
        %v613 = vpop.f32.mrb[0].mxu0
        %614 = vmatprep.mubr.f32.mxu0 0.0
        %615 = vmatmul.mubr.f32.gmra.mrb[0].mxu0 %v405
        %v616 = vpop.f32.mrb[0].mxu0
        %v617 = vadd.f32 0.0, %v616
        %v618 = vpop.f32.mrb[0].mxu0
        %619 = vmatprep.mubr.f32.mxu0 0.0
        %620 = vmatmul.mubr.f32.gmra.mrb[0].mxu0 %v408
        %v621 = vpop.f32.mrb[0].mxu0
        %v622 = vadd.f32 0.0, %v621
        %v623 = vpop.f32.mrb[0].mxu0
        %624 = vdwg.mxu0
        %627 = vrot.lane.b32.xlu0 %v487, 16
        %v628 = vpop.permute.xlu0 %627
        %629 = vrot.lane.b32.xlu0 %v492, 16
        %v630 = vpop.permute.xlu0 %629
        %635 = vrot.lane.b32.xlu0 %v497, 32
        %v636 = vpop.permute.xlu0 %635
        %637 = vrot.lane.b32.xlu0 %v502, 32
        %v638 = vpop.permute.xlu0 %637
        %643 = vrot.lane.b32.xlu0 %v507, 48
        %v644 = vpop.permute.xlu0 %643
        %645 = vrot.lane.b32.xlu0 %v512, 48
        %v646 = vpop.permute.xlu0 %645
        %651 = vrot.lane.b32.xlu0 %v517, 64
        %v652 = vpop.permute.xlu0 %651
        %653 = vrot.lane.b32.xlu0 %v522, 64
        %v654 = vpop.permute.xlu0 %653
        %659 = vrot.lane.b32.xlu0 %v527, 80
        %v660 = vpop.permute.xlu0 %659
        %661 = vrot.lane.b32.xlu0 %v532, 80
        %v662 = vpop.permute.xlu0 %661
        %667 = vrot.lane.b32.xlu0 %v537, 96
        %v668 = vpop.permute.xlu0 %667
        %669 = vrot.lane.b32.xlu0 %v542, 96
        %v670 = vpop.permute.xlu0 %669
        %675 = vrot.lane.b32.xlu0 %v547, 112
        %v676 = vpop.permute.xlu0 %675
        %677 = vrot.lane.b32.xlu0 %v552, 112
        %v678 = vpop.permute.xlu0 %677
        %683 = vrot.lane.b32.xlu0 %v567, 16
        %v684 = vpop.permute.xlu0 %683
        %685 = vrot.lane.b32.xlu0 %v572, 16
        %v686 = vpop.permute.xlu0 %685
        %691 = vrot.lane.b32.xlu0 %v577, 32
        %v692 = vpop.permute.xlu0 %691
        %693 = vrot.lane.b32.xlu0 %v582, 32
        %v694 = vpop.permute.xlu0 %693
        %699 = vrot.lane.b32.xlu0 %v587, 48
        %v700 = vpop.permute.xlu0 %699
        %701 = vrot.lane.b32.xlu0 %v592, 48
        %v702 = vpop.permute.xlu0 %701
        %707 = vrot.lane.b32.xlu0 %v597, 64
        %v708 = vpop.permute.xlu0 %707
        %709 = vrot.lane.b32.xlu0 %v602, 64
        %v710 = vpop.permute.xlu0 %709
        %715 = vrot.lane.b32.xlu0 %v607, 80
        %v716 = vpop.permute.xlu0 %715
        %717 = vrot.lane.b32.xlu0 %v612, 80
        %v718 = vpop.permute.xlu0 %717
        %723 = vrot.lane.b32.xlu0 %v617, 96
        %v724 = vpop.permute.xlu0 %723
        %725 = vrot.lane.b32.xlu0 %v622, 96
        %v726 = vpop.permute.xlu0 %725
        %v729 = vsel %vm319, %v477, %v628
        %v730 = vsel %vm319, %v482, %v630
        %vm731 = vcmask 261120
        %v732 = vsel %vm731, %v729, %v636
        %v733 = vsel %vm731, %v730, %v638
        %vm734 = vcmask 392192
        %v735 = vsel %vm734, %v732, %v644
        %v736 = vsel %vm734, %v733, %v646
        %vm737 = vcmask 523264
        %v738 = vsel %vm737, %v735, %v652
        %v739 = vsel %vm737, %v736, %v654
        %vm740 = vcmask 654336
        %v741 = vsel %vm740, %v738, %v660
        %v742 = vsel %vm740, %v739, %v662
        %vm743 = vcmask 785408
        %v744 = vsel %vm743, %v741, %v668
        %v745 = vsel %vm743, %v742, %v670
        %vm746 = vcmask 916480
        %v747 = vsel %vm746, %v744, %v676
        %v748 = vsel %vm746, %v745, %v678
        %v749 = vsel %vm319, %v557, %v684
        %v750 = vsel %vm319, %v562, %v686
        %v751 = vsel %vm731, %v749, %v692
        %v752 = vsel %vm731, %v750, %v694
        %v753 = vsel %vm734, %v751, %v700
        %v754 = vsel %vm734, %v752, %v702
        %v755 = vsel %vm737, %v753, %v708
        %v756 = vsel %vm737, %v754, %v710
        %v757 = vsel %vm740, %v755, %v716
        %v758 = vsel %vm740, %v756, %v718
        %v759 = vsel %vm743, %v757, %v724
        %v760 = vsel %vm743, %v758, %v726
        %v762 = vsel %vm319, %v285, 0
        %v765 = vsel %vm319, %v286, 0
        %767 = vmatprep.subr.mxu0 %v759
        %768 = vmatpush1.msra.mxu0 %v747
        %769 = vmatprep.subr.mxu0 %v760
        %770 = vmatpush1.msra.mxu0 %v748
        %771 = vmatprep.subr.mxu0 0.0
        %772 = vmatpush1.msra.mxu0 0.0
        %773 = vmatprep.subr.mxu0 0.0
        %774 = vmatpush1.msra.mxu0 0.0
        %775 = vmatprep.subr.mxu0 0.0
        %776 = vmatpush1.msra.mxu0 0.0
        %777 = vmatprep.subr.mxu0 0.0
        %778 = vmatpush1.msra.mxu0 0.0
        %779 = vmatprep.subr.mxu0 0.0
        %780 = vmatpush1.msra.mxu0 0.0
        %781 = vmatprep.subr.mxu0 0.0
        %782 = vmatpush1.msra.mxu0 0.0
        %783 = vmatprep.subr.mxu0 0.0
        %784 = vmatpush1.msra.mxu0 0.0
        %785 = vmatprep.subr.mxu0 0.0
        %786 = vmatpush1.msra.mxu0 0.0
        %787 = vmatprep.subr.mxu0 0.0
        %788 = vmatpush1.msra.mxu0 0.0
        %789 = vmatprep.subr.mxu0 0.0
        %790 = vmatpush1.msra.mxu0 0.0
        %791 = vmatprep.subr.mxu0 0.0
        %792 = vmatpush1.msra.mxu0 0.0
        %793 = vmatprep.subr.mxu0 0.0
        %794 = vmatpush1.msra.mxu0 0.0
        %795 = vmatprep.subr.mxu0 0.0
        %796 = vmatpush1.msra.mxu0 0.0
        %797 = vmatprep.subr.mxu0 0.0
        %798 = vmatpush1.msra.mxu0 0.0
        %799 = vmatprep.subr.mxu0 0.0
        %800 = vmatpush1.msra.mxu0 0.0
        %801 = vmatprep.subr.mxu0 0.0
        %802 = vmatpush1.msra.mxu0 0.0
        %803 = vmatprep.subr.mxu0 0.0
        %804 = vmatpush1.msra.mxu0 0.0
        %805 = vmatprep.subr.mxu0 0.0
        %806 = vmatpush1.msra.mxu0 0.0
        %807 = vmatprep.subr.mxu0 0.0
        %808 = vmatpush1.msra.mxu0 0.0
        %809 = vmatprep.subr.mxu0 0.0
        %810 = vmatpush1.msra.mxu0 0.0
        %811 = vmatprep.subr.mxu0 0.0
        %812 = vmatpush1.msra.mxu0 0.0
        %813 = vmatprep.subr.mxu0 0.0
        %814 = vmatpush1.msra.mxu0 0.0
        %815 = vmatprep.subr.mxu0 0.0
        %816 = vmatpush1.msra.mxu0 0.0
        %817 = vmatprep.subr.mxu0 0.0
        %818 = vmatpush1.msra.mxu0 0.0
        %819 = vmatprep.subr.mxu0 0.0
        %820 = vmatpush1.msra.mxu0 0.0
        %821 = vmatprep.subr.mxu0 0.0
        %822 = vmatpush1.msra.mxu0 0.0
        %823 = vmatprep.subr.mxu0 0.0
        %824 = vmatpush1.msra.mxu0 0.0
        %825 = vmatprep.subr.mxu0 0.0
        %826 = vmatpush1.msra.mxu0 0.0
        %827 = vmatprep.subr.mxu0 0.0
        %828 = vmatpush1.msra.mxu0 0.0
        %829 = vmatprep.subr.mxu0 0.0
        %830 = vmatpush1.msra.mxu0 0.0
        %831 = vmatprep.mubr.f32.mxu0 0.0
        %832 = vmatmul.mubr.f32.gmra.mrb[0].mxu0 %v762
        %v833 = vpop.f32.mrb[0].mxu0
        %v834 = vadd.f32 0.0, %v833
        %v835 = vpop.f32.mrb[0].mxu0
        %v836 = vadd.f32 0.0, %v835
        %837 = vmatprep.mubr.f32.mxu0 0.0
        %838 = vmatmul.mubr.f32.gmra.mrb[0].mxu0 %v765
        %v839 = vpop.f32.mrb[0].mxu0
        %v840 = vadd.f32 0.0, %v839
        %v841 = vpop.f32.mrb[0].mxu0
        %v842 = vadd.f32 0.0, %v841
        %843 = vdwg.mxu0
        %v844 = vmul.f32 %v834, %v834
        %v845 = vmul.f32 %v840, %v840
        %848 = vrot.lane.b32.xlu0 %v834, 80
        %v849 = vpop.permute.xlu0 %848
        %850 = vrot.lane.b32.xlu0 %v840, 80
        %v851 = vpop.permute.xlu0 %850
        %v854 = vmul.f32 %v834, %v849
        %v855 = vmul.f32 %v840, %v851
        %v856 = vmul.f32 %v854, 2.0
        %v857 = vmul.f32 %v855, 2.0
        %v858 = vadd.f32 %v856, 0.0001
        %v859 = vadd.f32 %v857, 0.0001
        %862 = vrot.lane.b32.xlu0 %v854, 64
        %v863 = vpop.permute.xlu0 %862
        %864 = vrot.lane.b32.xlu0 %v855, 64
        %v865 = vpop.permute.xlu0 %864
        %v868 = vsub.f32 %v836, %v863
        %v869 = vsub.f32 %v842, %v865
        %v870 = vmul.f32 %v868, 2.0
        %v871 = vmul.f32 %v869, 2.0
        %v872 = vadd.f32 %v870, 0.0009
        %v873 = vadd.f32 %v871, 0.0009
        %876 = vrot.lane.b32.xlu0 %v844, 80
        %v877 = vpop.permute.xlu0 %876
        %878 = vrot.lane.b32.xlu0 %v845, 80
        %v879 = vpop.permute.xlu0 %878
        %v882 = vadd.f32 %v844, %v877
        %v883 = vadd.f32 %v845, %v879
        %v884 = vadd.f32 %v882, 0.0001
        %v885 = vadd.f32 %v883, 0.0001
        %886 = vrot.lane.b32.xlu0 %v844, 96
        %v887 = vpop.permute.xlu0 %886
        %888 = vrot.lane.b32.xlu0 %v845, 96
        %v889 = vpop.permute.xlu0 %888
        %v892 = vsub.f32 %v834, %v887
        %v893 = vsub.f32 %v836, %v887
        %v894 = vsub.f32 %v840, %v889
        %v895 = vsub.f32 %v842, %v889
        %898 = vrot.lane.b32.xlu0 %v893, 80
        %v899 = vpop.permute.xlu0 %898
        %900 = vrot.lane.b32.xlu0 %v895, 80
        %v901 = vpop.permute.xlu0 %900
        %v904 = vadd.f32 %v892, %v899
        %v905 = vadd.f32 %v893, %v899
        %v906 = vadd.f32 %v894, %v901
        %v907 = vadd.f32 %v895, %v901
        %v908 = vadd.f32 %v904, 0.0009
        %v909 = vadd.f32 %v905, 0.0009
        %v910 = vadd.f32 %v906, 0.0009
        %v911 = vadd.f32 %v907, 0.0009
        %914 = vrot.lane.b32.xlu0 %v872, 64
        %v915 = vpop.permute.xlu0 %914
        %916 = vrot.lane.b32.xlu0 %v873, 64
        %v917 = vpop.permute.xlu0 %916
        %v920 = vmul.f32 %v858, %v915
        %v921 = vmul.f32 %v859, %v917
        %926 = vrot.lane.b32.xlu0 %v908, 32
        %v927 = vpop.permute.xlu0 %926
        %928 = vrot.lane.b32.xlu0 %v909, 32
        %v929 = vpop.permute.xlu0 %928
        %930 = vrot.lane.b32.xlu0 %v910, 32
        %v931 = vpop.permute.xlu0 %930
        %932 = vrot.lane.b32.xlu0 %v911, 32
        %v933 = vpop.permute.xlu0 %932
        %v934 = vsel %vm731, %v927, %v929
        %v935 = vsel %vm731, %v931, %v933
        %v938 = vmul.f32 %v884, %v934
        %v939 = vmul.f32 %v885, %v935
        %v940 = vrcp.pop %v938
        %v941 = vrcp.pop %v939
        %v942 = vmul.f32 %v920, %v940
        %v943 = vmul.f32 %v921, %v941
        %v944 = vsub.f32 %v289, %v295
        %v945 = vsub.f32 %v290, %v296
        %v946 = vsub.f32 %v291, %v297
        %v947 = vsub.f32 %v292, %v298
        %v948 = vsub.f32 %v293, %v299
        %v949 = vsub.f32 %v294, %v300
        %v950 = vand.u32 2147483647, %v944
        %v951 = vand.u32 2147483647, %v945
        %v952 = vand.u32 2147483647, %v946
        %v953 = vand.u32 2147483647, %v947
        %v954 = vand.u32 2147483647, %v948
        %v955 = vand.u32 2147483647, %v949
        %v956 = vsel %vm734, %v942, 0.0
        %v957 = vsel %vm734, %v943, 0.0
        %v958 = vadd.f32 %v956, %v957
        %959 = vadd.xlane.f32.xlu0 %v958
        %v960 = vpop.xlane.xlu0 %959
        %v961 = vrot.slane %v960, 4
        %v962 = vadd.f32 %v960, %v961
        %v963 = vrot.slane %v962, 2
        %v964 = vadd.f32 %v962, %v963
        %v965 = vrot.slane %v964, 1
        %v966 = vadd.f32 %v964, %v965
        %s967 = vtos %v966
        %v968 = vsel %vm319, %v950, 0.0
        %v969 = vsel %vm319, %v951, 0.0
        %v970 = vadd.f32 %v968, %v969
        %v971 = vsel %vm319, %v952, 0.0
        %v972 = vadd.f32 %v970, %v971
        %v973 = vsel %vm319, %v953, 0.0
        %v974 = vadd.f32 %v972, %v973
        %v975 = vsel %vm319, %v954, 0.0
        %v976 = vadd.f32 %v974, %v975
        %v977 = vsel %vm319, %v955, 0.0
        %v978 = vadd.f32 %v976, %v977
        %979 = vadd.xlane.f32.xlu0 %v978
        %v980 = vpop.xlane.xlu0 %979
        %v981 = vrot.slane %v980, 4
        %v982 = vadd.f32 %v980, %v981
        %v983 = vrot.slane %v982, 2
        %v984 = vadd.f32 %v982, %v983
        %v985 = vrot.slane %v984, 1
        %v986 = vadd.f32 %v984, %v985
        %s987 = vtos %v986
        %s988 = smul.f32 %s967, 0.0013020834
        %s989 = smul.f32 %s988, -0.7
        %s990 = smul.f32 %s987, 0.00390625
        %s991 = smul.f32 %s990, 0.3
        %s992 = sadd.f32 %s989, %s991
        %v993 = vstv %s992
        %994 = vst [vmem:[%s284] sm:$0xff] %v993
        %s995 = sand.u32 %s127, 1
        %s996 = scalar_lea.sflag [#allocation4], %s995
        %s997 = sand.u32 %s127, 1
        %s998 = smul.addr %s997, 8
        %s999 = scalar_lea.vmem [#allocation10], %s998
        // Predicated region
        $region53: #{tpu_custom_call.1} parent=35 // pred_check
          %p1000 = pneg %p137
        $region54: #{tpu_custom_call.1} parent=35 // pred_check_branch
          %1002 = sbr.rel (%p1000) target = $region56
        $region55: #{tpu_custom_call.1} parent=35 // pred_region
          %s1004 = ssub.s32 128, 128
          %1005 = vsyncadd %s996, %s1004
          %s1006 = smul.addr %s25, 128
          %s1007 = scalar_lea.hbm %s4, %s1006
          %s1009 = sshll.u32 %s999, 4
          %s1010 = int_to_ptr.vmem [resolvable:$true] %s1009
          %1012 = dma.vmem_to_hbm [thread:$0]  %s1010, 128, %s1007, %s996
        $region56: #{tpu_custom_call.1} parent=35 // pred_fallthru
          _
      $region36: #{tpu_custom_call.1} parent=5 // pred_fallthru
        _
      %p1013 = scmp.le.s32.totalorder 2, %s20
      // Predicated region
      $region57: #{tpu_custom_call.1} parent=5 // pred_check
        %p1014 = pneg %p1013
      $region58: #{tpu_custom_call.1} parent=5 // pred_check_branch
        %1016 = sbr.rel (%p1014) target = $region60
      $region59: #{tpu_custom_call.1} parent=5 // pred_region
        %s1017 = ssub.s32 %s20, 2
        // Predicated region
        $region61: #{tpu_custom_call.1} parent=59 // pred_check
          %p1018 = pneg %p143
        $region62: #{tpu_custom_call.1} parent=59 // pred_check_branch
          %1020 = sbr.rel (%p1018) target = $region64
        $region63: #{tpu_custom_call.1} parent=59 // pred_region
          %s1021 = sand.u32 %s128, 1
          %s1022 = scalar_lea.sflag [#allocation4], %s1021
          %s1023 = sand.u32 %s128, 1
          %s1024 = smul.addr %s1023, 8
          %s1025 = scalar_lea.vmem [#allocation10], %s1024
          %1026 = dma.done %s1022, 128
        $region64: #{tpu_custom_call.1} parent=59 // pred_fallthru
          _
      $region60: #{tpu_custom_call.1} parent=5 // pred_fallthru
        _
    $region6: #{tpu_custom_call.1} parent=1 // loop_footer
      %s24 = sadd.s32 1, %s20
    $region7: #{tpu_custom_call.1} parent=1 // loop_footer_branch
      %19 = sbr.rel target = $region3
    $region8: #{tpu_custom_call.1} parent=1 // loop_exit
      _
    %1027 = vsyncpa [#allocation3], 1
    %s1028 = scalar_lea.sflag [#allocation3], 1
    %1029 = vsyncpa %s1028, 1
    %1030 = vsyncpa [#allocation6], 1
    %s1031 = scalar_lea.sflag [#allocation6], 1
    %1032 = vsyncpa %s1031, 1
    %1033 = vsyncpa [#allocation9], 1
    %1034 = vsyncpa [#allocation4], 1
    %s1035 = scalar_lea.sflag [#allocation4], 1
    %1036 = vsyncpa %s1035, 1

</llo_original>
